<compile_context>
chip_gen: v7x
topology: tpu7x:2x2x1
jax: 0.10.0
libtpu: 0.0.40
codegen_flags: <defaults>
</compile_context>

<pallas_src>
from types import SimpleNamespace

import jax
import jax.numpy as jnp
from jax.experimental import pallas as pl
from jax.experimental.pallas import tpu as pltpu


# ------------------------------ VMEM budgeting ------------------------------ #

_MASK_ITEMSIZE = 2            # mask is streamed as bfloat16 [B, S, 1]
_MASK_LANE_PAD = 128          # trailing dim of 1 is lane-padded to 128 in VMEM
_SCRATCH_HEADROOM = 8 << 20   # output block + accumulators + Mosaic internals
_MIN_BLOCK_TARGET = 4 << 20   # grow tiles until per-step hidden block ~4 MiB


def _vmem_limit_bytes():
    """Generation-aware scoped-VMEM limit (v5e scoped default is only 16 MiB)."""
    try:
        cap = int(pltpu.get_tpu_info().vmem_capacity_bytes)
    except Exception:
        cap = 64 << 20                      # conservative fallback (v7x physical)
    return min((cap * 3) // 4, 96 << 20)    # ~96 MiB on v5e/v6e, ~48 MiB on v7x


def _choose_tiles(B, S, H, itemsize, n_hidden, budget):
    """Pick (TB, TS) so double-buffered hidden + mask blocks fit `budget`."""
    align = max(16, 32 // max(itemsize, 1))   # sublane alignment for TS (covers bf16 mask)
    # Double-buffered bytes per (batch row, sequence position), incl. the mask block.
    per_pos = 2 * (n_hidden * H * itemsize + _MASK_LANE_PAD * _MASK_ITEMSIZE)

    TB = min(B, 8)
    # Keep >= 2 "parallel" batch blocks so both v7x TensorCores stream DMAs.
    if B >= 2 and pl.cdiv(B, TB) < 2:
        TB = max(1, B // 2)

    def ts_cap(tb):
        return budget // max(1, per_pos * tb)

    if ts_cap(TB) >= S:
        TS = S
        # Short sequences: grow TB (x2, staying a multiple of 8) while the whole
        # sequence still fits, >= 2 batch blocks remain and the per-step block is
        # small (avoids being bound by the ~0.35us per-grid-step overhead).
        while (TB % 8 == 0
               and n_hidden * TB * S * H * itemsize < _MIN_BLOCK_TARGET
               and TB * 2 <= B
               and pl.cdiv(B, TB * 2) >= 2
               and ts_cap(TB * 2) >= S):
            TB *= 2
    else:
        cap = ts_cap(TB)
        # Prefer an aligned TS that divides S (no ragged tail) ...
        TS = 0
        t = (cap // align) * align
        while t >= align:
            if S % t == 0:
                TS = t
                break
            t -= align
        if TS == 0:
            # ... else an aligned TS; the kernel masks the ragged tail in-place.
            TS = max(align, (cap // align) * align)
        TS = min(TS, S)
    return TB, TS


# ---------------------------------- kernels --------------------------------- #

def _cls_kernel(h_ref, out_ref):
    # h_ref: [TB, S_blk, H]; only sequence position 0 is needed.
    out_ref[...] = h_ref[:, 0, :]


def _make_avg_kernel(n_hidden, seq_len, ts, ragged_s, out3d):
    """Masked mean over sequence of sum(hiddens) / n_hidden, resident f32 acc."""

    def kernel(*refs):
        mask_ref = refs[0]
        h_refs = refs[1:1 + n_hidden]
        out_ref = refs[1 + n_hidden]
        num_acc = refs[2 + n_hidden]          # [TB, H] f32
        den_acc = refs[3 + n_hidden]          # [TB, 1] f32
        s = pl.program_id(1)

        @pl.when(s == 0)
        def _():
            num_acc[...] = jnp.zeros_like(num_acc)
            den_acc[...] = jnp.zeros_like(den_acc)

        m = mask_ref[...].astype(jnp.float32)          # [TB, TS, 1] lane-broadcast
        h = h_refs[0][...].astype(jnp.float32)         # [TB, TS, H]
        for r in h_refs[1:]:
            h = h + r[...].astype(jnp.float32)

        if ragged_s:
            # Last sequence block may extend past S: zero the garbage tail
            # (select, so NaN/inf garbage cannot leak into the accumulators).
            pos = s * ts + jax.lax.broadcasted_iota(jnp.int32, m.shape, 1)
            valid = pos < seq_len                      # [TB, TS, 1]
            m = jnp.where(valid, m, 0.0)
            hm = jnp.where(valid, h * m, 0.0)          # broadcast over H
        else:
            hm = h * m

        num_acc[...] += jnp.sum(hm, axis=1)            # [TB, H]
        den_acc[...] += jnp.sum(m, axis=1)             # [TB, 1]

        @pl.when(s == pl.num_programs(1) - 1)
        def _():
            # NOTE: an all-zero mask row divides by zero (same as the reference).
            # The layer-pair 0.5 is folded into the once-per-row normalization.
            res = (num_acc[...] / (float(n_hidden) * den_acc[...])).astype(out_ref.dtype)
            if out3d:
                out_ref[...] = res[:, None, :]
            else:
                out_ref[...] = res

    return kernel


# ---------------------------------- wrappers --------------------------------- #

def cls_pool(last_hidden):
    """out[b, h] = last_hidden[b, 0, h]; streams only an 8-row seq window."""
    B, S, H = last_hidden.shape
    TB = min(B, 64)                         # == B or a multiple of 8
    S_blk = S if S < 8 else 8               # sublane-aligned window around s=0
    return pl.pallas_call(
        _cls_kernel,
        out_shape=jax.ShapeDtypeStruct((B, H), last_hidden.dtype),
        grid=(pl.cdiv(B, TB),),
        in_specs=[pl.BlockSpec((TB, S_blk, H), lambda b: (b, 0, 0))],
        out_specs=pl.BlockSpec((TB, H), lambda b: (b, 0)),
        compiler_params=pltpu.CompilerParams(dimension_semantics=("parallel",)),
    )(last_hidden)


def _masked_avg_call(attention_mask, hiddens, tile_b=None, tile_s=None):
    """Masked mean over sequence of sum(hiddens) (divided by len(hiddens))."""
    n = len(hiddens)
    B, S, H = hiddens[0].shape
    h_dtype = hiddens[0].dtype
    itemsize = jnp.dtype(h_dtype).itemsize
    out_dtype = jnp.result_type(h_dtype, attention_mask.dtype)

    vmem_limit = _vmem_limit_bytes()
    budget = max(8 << 20, vmem_limit - _SCRATCH_HEADROOM)
    TB, TS = _choose_tiles(B, S, H, itemsize, n, budget)
    if tile_b is not None:
        TB = min(tile_b, B)
    if tile_s is not None:
        TS = min(tile_s, S)

    ragged_s = (S % TS) != 0
    # Output stays 2-D whenever the batch tile is (8,128)-clean; otherwise emit
    # [B, 1, H] (all block dims full/aligned) and reshape in the wrapper.
    out3d = not (TB == B or TB % 8 == 0)

    # Mask pre-shaped [B, S, 1] in bfloat16 (0/1 masks are exact); sequence sits
    # on sublanes so the broadcast over H in-kernel is a pure lane-broadcast.
    mask3 = attention_mask.astype(jnp.bfloat16).reshape(B, S, 1)

    hidden_spec = pl.BlockSpec((TB, TS, H), lambda b, s: (b, s, 0))
    mask_spec = pl.BlockSpec((TB, TS, 1), lambda b, s: (b, s, 0))
    if out3d:
        out_shape = jax.ShapeDtypeStruct((B, 1, H), out_dtype)
        out_spec = pl.BlockSpec((TB, 1, H), lambda b, s: (b, 0, 0))
    else:
        out_shape = jax.ShapeDtypeStruct((B, H), out_dtype)
        out_spec = pl.BlockSpec((TB, H), lambda b, s: (b, 0))

    kernel = _make_avg_kernel(n, S, TS, ragged_s, out3d)

    out = pl.pallas_call(
        kernel,
        out_shape=out_shape,
        grid=(pl.cdiv(B, TB), pl.cdiv(S, TS)),        # reduction (S) axis last
        in_specs=[mask_spec] + [hidden_spec] * n,
        out_specs=out_spec,                           # resident over S
        scratch_shapes=[pltpu.VMEM((TB, H), jnp.float32),
                        pltpu.VMEM((TB, 1), jnp.float32)],
        compiler_params=pltpu.CompilerParams(
            dimension_semantics=("parallel", "arbitrary"),
            vmem_limit_bytes=vmem_limit),
    )(mask3, *hiddens)

    if out3d:
        out = out.reshape(B, H)
    return out


def avg_pool(attention_mask, last_hidden, tile_b=None, tile_s=None):
    return _masked_avg_call(attention_mask, [last_hidden], tile_b, tile_s)


def avg_pair_pool(attention_mask, hidden_a, hidden_b, tile_b=None, tile_s=None):
    return _masked_avg_call(attention_mask, [hidden_a, hidden_b], tile_b, tile_s)


class Pooler:
    """JAX/Pallas port of the PyTorch Pooler (parameter-free)."""

    def __init__(self, pooler_type):
        assert pooler_type in ['cls', 'cls_before_pooler', 'avg',
                               'avg_top2', 'avg_first_last'], \
            'unrecognized pooling type %s' % pooler_type
        self.pooler_type = pooler_type

    def __call__(self, attention_mask, outputs):
        last_hidden = outputs.last_hidden_state
        hidden_states = outputs.hidden_states
        if self.pooler_type in ['cls_before_pooler', 'cls']:
            return cls_pool(last_hidden)
        elif self.pooler_type == 'avg':
            return avg_pool(attention_mask, last_hidden)
        elif self.pooler_type == 'avg_first_last':
            return avg_pair_pool(attention_mask, hidden_states[0],
                                 hidden_states[-1])
        elif self.pooler_type == 'avg_top2':
            return avg_pair_pool(attention_mask, hidden_states[-2],
                                 hidden_states[-1])
        else:
            raise NotImplementedError


# ---------------------------------- reference -------------------------------- #

def _ref_pool(pooler_type, attention_mask, outputs):
    last_hidden = outputs.last_hidden_state
    hidden_states = outputs.hidden_states
    mask = attention_mask.astype(jnp.float32)
    if pooler_type in ['cls_before_pooler', 'cls']:
        return last_hidden[:, 0]
    if pooler_type == 'avg':
        return (last_hidden * mask[:, :, None]).sum(1) / mask.sum(-1)[:, None]
    if pooler_type == 'avg_first_last':
        h = (hidden_states[0] + hidden_states[-1]) / 2.0
        return (h * mask[:, :, None]).sum(1) / mask.sum(-1)[:, None]
    if pooler_type == 'avg_top2':
        h = (hidden_states[-2] + hidden_states[-1]) / 2.0
        return (h * mask[:, :, None]).sum(1) / mask.sum(-1)[:, None]
    raise NotImplementedError


# ------------------------------------ main ------------------------------------ #

if __name__ == "__main__":
    key = jax.random.PRNGKey(0)
    B, S, H = 2, 32, 128
    n_layers = 3  # hidden_states tuple: embeddings + 2 layers

    keys = jax.random.split(key, n_layers + 1)
    hidden_states = tuple(
        jax.random.normal(keys[i], (B, S, H), dtype=jnp.float32)
        for i in range(n_layers))
    last_hidden_state = hidden_states[-1]
    pooler_output = jax.random.normal(keys[n_layers], (B, H), jnp.float32)

    # attention mask with some padding (each row has at least one valid token)
    lengths = jnp.array([S, S - 5], dtype=jnp.int32)
    attention_mask = (jnp.arange(S)[None, :] < lengths[:, None]).astype(jnp.float32)

    outputs = SimpleNamespace(last_hidden_state=last_hidden_state,
                              pooler_output=pooler_output,
                              hidden_states=hidden_states)

    checks = []
    for ptype in ['cls', 'cls_before_pooler', 'avg', 'avg_top2', 'avg_first_last']:
        pooler = Pooler(ptype)
        out = jax.block_until_ready(pooler(attention_mask, outputs))
        ref = _ref_pool(ptype, attention_mask, outputs)
        checks.append(out.shape == (B, H)
                      and bool(jnp.allclose(out, ref, atol=1e-5, rtol=1e-5)))

    # Multi-tile sequence reduction (grid > 1 on S, resident accumulators).
    out = jax.block_until_ready(avg_pool(attention_mask, last_hidden_state, tile_s=16))
    checks.append(bool(jnp.allclose(out, _ref_pool('avg', attention_mask, outputs),
                                    atol=1e-5, rtol=1e-5)))
    out = jax.block_until_ready(avg_pair_pool(attention_mask, hidden_states[-2],
                                              hidden_states[-1], tile_s=16))
    checks.append(bool(jnp.allclose(out, _ref_pool('avg_top2', attention_mask, outputs),
                                    atol=1e-5, rtol=1e-5)))

    # Ragged sequence tail (in-kernel iota mask) + ragged batch block (clipped write).
    B2, S2 = 3, 24
    k2 = jax.random.split(jax.random.PRNGKey(1), 2)
    h2a = jax.random.normal(k2[0], (B2, S2, H), jnp.float32)
    h2b = jax.random.normal(k2[1], (B2, S2, H), jnp.float32)
    len2 = jnp.array([24, 10, 17], dtype=jnp.int32)
    mask2 = (jnp.arange(S2)[None, :] < len2[:, None]).astype(jnp.float32)

    out = jax.block_until_ready(avg_pool(mask2, h2a, tile_b=2, tile_s=16))
    ref = (h2a * mask2[:, :, None]).sum(1) / mask2.sum(-1)[:, None]
    checks.append(bool(jnp.allclose(out, ref, atol=1e-5, rtol=1e-5)))

    out = jax.block_until_ready(avg_pair_pool(mask2, h2a, h2b, tile_b=2, tile_s=16))
    ref = ((h2a + h2b) / 2.0 * mask2[:, :, None]).sum(1) / mask2.sum(-1)[:, None]
    checks.append(bool(jnp.allclose(out, ref, atol=1e-5, rtol=1e-5)))

    if all(checks):
        print("KERNEL_OK")
    else:
        print("KERNEL_MISMATCH", checks)
</pallas_src>

<mosaic_0001>
module attributes {stable_mosaic.version = 11 : i64} {
  func.func @_cls_kernel(%arg0: i32, %arg1: memref<2x8x128xf32, #tpu.memory_space<vmem>>, %arg2: memref<2x128xf32, #tpu.memory_space<vmem>>) attributes {dimension_semantics = [#tpu.dimension_semantics<parallel>], iteration_bounds = array<i64: 1>, scalar_prefetch = 0 : i64, scratch_operands = 0 : i64, tpu.core_type = #tpu.core_type<tc>, window_params = [{transform_indices = @transform_0, window_bounds = array<i64: 2, 8, 128>}, {transform_indices = @transform_1, window_bounds = array<i64: 2, 128>}]} {
    %c0 = arith.constant 0 : index
    %c0_0 = arith.constant 0 : index
    %c0_1 = arith.constant 0 : index
    %0 = vector.load %arg1[%c0, %c0_0, %c0_1] : memref<2x8x128xf32, #tpu.memory_space<vmem>>, vector<2x1x128xf32>
    %1 = vector.shape_cast %0 : vector<2x1x128xf32> to vector<2x128xf32>
    %c0_2 = arith.constant 0 : index
    %c0_3 = arith.constant 0 : index
    %2 = vector.load %arg2[%c0_2, %c0_3] : memref<2x128xf32, #tpu.memory_space<vmem>>, vector<2x128xf32>
    tpu.vector_store %arg2[%c0_2, %c0_3], %1 {strides = array<i32>} : memref<2x128xf32, #tpu.memory_space<vmem>>, vector<2x128xf32>,
    return
  }
  func.func @transform_0(%arg0: i32) -> (i32, i32, i32) {
    %c0_i32 = arith.constant 0 : i32
    %c0_i32_0 = arith.constant 0 : i32
    %c0_i32_1 = arith.constant 0 : i32
    return %arg0, %c0_i32, %c0_i32_0 : i32, i32, i32
  }
  func.func @transform_1(%arg0: i32) -> (i32, i32) {
    %c0_i32 = arith.constant 0 : i32
    %c0_i32_0 = arith.constant 0 : i32
    return %arg0, %c0_i32 : i32, i32
  }
}

</mosaic_0001>

<llo_original>
// kernel: tpu_custom_call.1
$region0: #{tpu_custom_call.1}
  #allocation0 [shape = 'u32[]', space=smem, size = 0x4, offset = 0x4, fixed_abs, tag = 'smem constant byte address 0x4 - core index']
  #allocation1 [shape = 'u32[144,128]{1,0:T(1,128)}', space=vmem, size = 0x12000, scoped, tag = 'internal scratch']
  %s0 = inlined_call_operand.hbm [shape: f32[2,32,128], index: 0, kind: input, shape index: {}]
  %s1 = inlined_call_operand.hbm [shape: f32[2,128], index: 1, kind: output, shape index: {}]
  %s2 = sld [smem:[#allocation0]]
  $region18: #{tpu_custom_call.1} parent=0
    _
  %s4 = ssub.s32 1, %s2
  %s5 = scalar_select 0, %s4, %s2
  $region1: #{tpu_custom_call.1} parent=0
    #allocation2 [shape = 'u8[8192]{0}', space=vmem, size = 0x2000, scoped, tag = 'input window, operand 0, single buffered']
    #allocation3 [shape = 's32[1]{0}', space=sflag, size = 0x4, scoped, tag = 'scoped memory for tpu_custom_call.1']
    #allocation4 [shape = 's32[1]{0}', space=sflag, size = 0x4, scoped, tag = 'scoped memory for tpu_custom_call.1']
    #allocation5 [shape = 'u8[1024]{0}', space=vmem, size = 0x400, scoped, tag = 'output window, operand 0, single buffered']
    %6 = vsyncpa [#allocation3], 0
    %7 = vsyncpa [#allocation4], 0
    // Predicated region
    $region2: #{tpu_custom_call.1} parent=1 // pred_check
      _
    $region3: #{tpu_custom_call.1} parent=1 // pred_check_branch
      %9 = sbr.rel (0) target = $region5
    $region4: #{tpu_custom_call.1} parent=1 // pred_region
      %s11 = ssub.s32 256, 256
      %12 = vsyncadd [#allocation3], %s11
      %s13 = sshll.u32 [#allocation2], 4
      %s14 = int_to_ptr.vmem [resolvable:$true] %s13
      %19 = dma.hbm_to_vmem [thread:$0]  %s0, 256, %s14, [#allocation3], 512, 128, 8
    $region5: #{tpu_custom_call.1} parent=1 // pred_fallthru
      _
    // Predicated region
    $region6: #{tpu_custom_call.1} parent=1 // pred_check
      _
    $region7: #{tpu_custom_call.1} parent=1 // pred_check_branch
      %21 = sbr.rel (0) target = $region9
    $region8: #{tpu_custom_call.1} parent=1 // pred_region
      %22 = dma.done [#allocation3], 256
    $region9: #{tpu_custom_call.1} parent=1 // pred_fallthru
      _
    %v23 = vld [vmem:[#allocation2] sm:$0x1]
    %v24 = vld [vmem:[#allocation2 + $0x8] sm:$0x1]
    %v27 = vrot.slane %v24, 7
    %vm28 = vcmask 1041409
    %v29 = vsel %vm28, %v27, %v23
    %31 = vst [vmem:[#allocation5] sm:$0x3] %v29
    // Predicated region
    $region10: #{tpu_custom_call.1} parent=1 // pred_check
      _
    $region11: #{tpu_custom_call.1} parent=1 // pred_check_branch
      %33 = sbr.rel (0) target = $region13
    $region12: #{tpu_custom_call.1} parent=1 // pred_region
      %s35 = ssub.s32 32, 32
      %36 = vsyncadd [#allocation4], %s35
      %s38 = sshll.u32 [#allocation5], 4
      %s39 = int_to_ptr.vmem [resolvable:$true] %s38
      %41 = dma.vmem_to_hbm [thread:$0]  %s39, 32, %s1, [#allocation4]
    $region13: #{tpu_custom_call.1} parent=1 // pred_fallthru
      _
    // Predicated region
    $region14: #{tpu_custom_call.1} parent=1 // pred_check
      _
    $region15: #{tpu_custom_call.1} parent=1 // pred_check_branch
      %43 = sbr.rel (0) target = $region17
    $region16: #{tpu_custom_call.1} parent=1 // pred_region
      %44 = dma.done [#allocation4], 32
    $region17: #{tpu_custom_call.1} parent=1 // pred_fallthru
      _
    %45 = vsyncpa [#allocation3], 1
    %46 = vsyncpa [#allocation4], 1

</llo_original>
